<compile_context>
chip_gen: v5e
topology: v5e:2x2
jax: 0.10.0
libtpu: 0.0.40
codegen_flags: <defaults>
</compile_context>

<pallas_src>
from functools import partial

import numpy as np
import jax
import jax.numpy as jnp
from jax.experimental import pallas as pl
from jax.experimental.pallas import tpu as pltpu


# --------------------------------------------------------------------------- #
# Kernel
# --------------------------------------------------------------------------- #
def _attention_pos_kernel(x_ref, y_ref, w_ref, b_ref,
                          xatt_ref, yatt_ref, att_ref, *, approx_recip):
    Bt, Lx, two_d = x_ref.shape
    _, Ly, d = y_ref.shape
    f32 = jnp.float32
    mxu_dtype = x_ref.dtype          # bf16 in the perf path, f32 for exact parity

    x = x_ref[...]                   # (Bt, Lx, 2d)  mxu_dtype
    y = y_ref[...]                   # (Bt, Ly, d)   mxu_dtype
    w = w_ref[...]                   # (2d, d)       mxu_dtype  (== Linear.weight.T)
    b = b_ref[...].astype(f32)       # (1, d)        f32

    def recip(s):
        # Exact by default (approx reciprocal is not accurate enough for parity
        # with the PyTorch module); approx=True routes to the EUP (frees VALU).
        return pl.reciprocal(s, approx=True) if approx_recip else 1.0 / s

    # ---- Linear over the whole batch block: fold (Bt, Lx) into the MXU M dim.
    # (Leading-dim collapse; layout-free.  f32 accumulation on the MXU.)
    _x = (jnp.dot(x.reshape(Bt * Lx, two_d), w,
                  preferred_element_type=f32) + b).reshape(Bt, Lx, d)

    # ---- attention[b] = _x[b] @ y[b]^T : batched contraction over d, no .T.
    att = jnp.einsum("bld,bmd->blm", _x.astype(mxu_dtype), y,
                     preferred_element_type=f32)                 # (Bt, Lx, Ly) f32
    att_ref[...] = att.astype(att_ref.dtype)

    # ---- dim=2 softmax path FIRST (only one exp() quadratic slab live at once).
    # Normalization deferred past the matmul: scale the (Lx, d) result, not the
    # (Lx, Ly) probabilities.
    px = jnp.exp(att - jnp.max(att, axis=2, keepdims=True))      # (Bt, Lx, Ly) f32
    inv_sx = recip(jnp.sum(px, axis=2, keepdims=True))           # (Bt, Lx, 1)
    xatt = jnp.einsum("blm,bmd->bld", px.astype(mxu_dtype), y,
                      preferred_element_type=f32)                # (Bt, Lx, d)
    xatt_ref[...] = (xatt * inv_sx).astype(xatt_ref.dtype)

    # ---- dim=1 softmax path: contraction over Lx on both operands (no
    # transpose of the probability matrix).
    # TODO(synk): if the bundle shows VALU saturating at large Lx, replace this
    # normalization with an appended ones-column in the contraction (MXU sums).
    py = jnp.exp(att - jnp.max(att, axis=1, keepdims=True))      # (Bt, Lx, Ly) f32
    py = py * recip(jnp.sum(py, axis=1, keepdims=True))
    yatt_ref[...] = jnp.einsum("blm,blc->bmc", py.astype(mxu_dtype), x,
                               preferred_element_type=f32
                               ).astype(yatt_ref.dtype)          # (Bt, Ly, 2d)


# --------------------------------------------------------------------------- #
# VMEM-budget-driven batch blocking
# --------------------------------------------------------------------------- #
def _vmem_limit_bytes():
    """Generation-aware scoped VMEM limit (v5e/v6e: 128 MiB phys, v7x: 64 MiB)."""
    try:
        phys = int(pltpu.get_tpu_info().vmem_capacity_bytes)
    except Exception:
        phys = 64 << 20            # conservative fallback: v7x has the least VMEM
    return min(int(phys * 0.75), 96 << 20)   # leave headroom for compiler scratch


def _block_vmem_bytes(bt, Lx, Ly, d, in_isize, out_isize, att_isize):
    """Estimated VMEM footprint of one grid step with batch block `bt`."""
    two_d = 2 * d
    x_blk = bt * Lx * two_d * in_isize
    y_blk = bt * Ly * d * in_isize
    xatt_blk = bt * Lx * d * out_isize
    yatt_blk = bt * Ly * two_d * out_isize
    att_blk = bt * Lx * Ly * att_isize
    pipelined = 2 * (x_blk + y_blk + xatt_blk + yatt_blk + att_blk)  # double buffers
    resident = two_d * d * in_isize + d * 4                          # weight + bias
    # In-flight f32 intermediates: att + one exp() slab (px/py sequenced, never
    # both live) + the Linear result.
    live = 2 * bt * Lx * Ly * 4 + bt * Lx * d * 4
    return pipelined + resident + live


def _pick_batch_block(B, Lx, Ly, d, in_isize, out_isize, att_isize, budget):
    """Largest divisor of B fitting the VMEM budget, while keeping >= 2 grid
    steps whenever B > 1 (v7x megacore sharding + DMA/compute overlap)."""
    max_bt = B if B == 1 else B // 2
    best = 1
    for bt in range(1, max(max_bt, 1) + 1):
        if B % bt:
            continue
        if _block_vmem_bytes(bt, Lx, Ly, d, in_isize, out_isize, att_isize) <= budget:
            best = bt
    return best


# --------------------------------------------------------------------------- #
# Wrapper
# --------------------------------------------------------------------------- #
def base_attention_pos(x, y, weight, bias, *, batch_block=None,
                       mxu_dtype=jnp.bfloat16, out_dtype=jnp.float32,
                       att_dtype=None, approx_recip=False):
    """x: (B, Lx, 2d), y: (B, Ly, d), weight: (d, 2d) [PyTorch layout], bias: (d,).

    mxu_dtype: operand dtype fed to the MXU (bf16 default; f32 for exact parity).
    att_dtype: dtype of the stored attention output (f32 default; bf16 halves the
               dominant HBM writeback at production Lx/Ly).
    """
    B, Lx, two_d = x.shape
    By, Ly, d = y.shape
    assert By == B and two_d == 2 * d
    att_dtype = out_dtype if att_dtype is None else att_dtype

    # Cast MXU operands in the wrapper so HBM->VMEM DMA bytes are halved too;
    # accumulation inside the kernel stays f32.
    x_in = x.astype(mxu_dtype)
    y_in = y.astype(mxu_dtype)
    w_in = weight.T.astype(mxu_dtype)            # (2d, d): kernel computes x @ w
    b_in = bias.reshape(1, d).astype(jnp.float32)

    in_isize = np.dtype(mxu_dtype).itemsize
    out_isize = np.dtype(out_dtype).itemsize
    att_isize = np.dtype(att_dtype).itemsize

    vmem_limit = _vmem_limit_bytes()
    if batch_block is None:
        batch_block = _pick_batch_block(B, Lx, Ly, d, in_isize, out_isize,
                                        att_isize, budget=int(0.7 * vmem_limit))
    Bt = batch_block
    assert B % Bt == 0, "batch block must divide batch"
    grid = (B // Bt,)

    out_shapes = (
        jax.ShapeDtypeStruct((B, Lx, d), out_dtype),        # x_attention
        jax.ShapeDtypeStruct((B, Ly, two_d), out_dtype),    # y_attention
        jax.ShapeDtypeStruct((B, Lx, Ly), att_dtype),       # attention
    )

    # Advisory cost so XLA schedules surrounding ops around the kernel.
    flops = (2 * B * Lx * two_d * d          # Linear
             + 2 * B * Lx * Ly * d           # attention logits
             + 2 * B * Lx * Ly * d           # x_attention
             + 2 * B * Lx * Ly * two_d)      # y_attention
    transcendentals = 2 * B * Lx * Ly        # two exp() passes
    bytes_accessed = (x_in.size * in_isize + y_in.size * in_isize
                      + w_in.size * in_isize + b_in.size * 4
                      + B * Lx * d * out_isize + B * Ly * two_d * out_isize
                      + B * Lx * Ly * att_isize)

    return pl.pallas_call(
        partial(_attention_pos_kernel, approx_recip=approx_recip),
        out_shape=out_shapes,
        grid_spec=pl.GridSpec(
            grid=grid,
            in_specs=[
                pl.BlockSpec((Bt, Lx, two_d), lambda i: (i, 0, 0)),
                pl.BlockSpec((Bt, Ly, d), lambda i: (i, 0, 0)),
                pl.BlockSpec((two_d, d), lambda i: (0, 0)),   # VMEM-resident weight
                pl.BlockSpec((1, d), lambda i: (0, 0)),       # VMEM-resident bias
            ],
            out_specs=[
                pl.BlockSpec((Bt, Lx, d), lambda i: (i, 0, 0)),
                pl.BlockSpec((Bt, Ly, two_d), lambda i: (i, 0, 0)),
                pl.BlockSpec((Bt, Lx, Ly), lambda i: (i, 0, 0)),
            ],
        ),
        compiler_params=pltpu.CompilerParams(
            dimension_semantics=("parallel",),
            vmem_limit_bytes=vmem_limit),
        cost_estimate=pl.CostEstimate(flops=flops,
                                      transcendentals=transcendentals,
                                      bytes_accessed=bytes_accessed),
    )(x_in, y_in, w_in, b_in)


# --------------------------------------------------------------------------- #
# Pure-JAX reference (matches the PyTorch forward; compute_dtype lets us build
# an operand-matched reference for the bf16 MXU path).
# --------------------------------------------------------------------------- #
def _reference(x, y, weight, bias, compute_dtype=jnp.float32):
    f32 = jnp.float32
    hi = jax.lax.Precision.HIGHEST
    xc, yc, wc = x.astype(compute_dtype), y.astype(compute_dtype), weight.astype(compute_dtype)
    _x = jnp.einsum("blk,dk->bld", xc, wc,
                    preferred_element_type=f32, precision=hi) + bias
    att = jnp.einsum("bld,bmd->blm", _x.astype(compute_dtype), yc,
                     preferred_element_type=f32, precision=hi)
    px = jax.nn.softmax(att, axis=2).astype(compute_dtype)
    x_att = jnp.einsum("blm,bmd->bld", px, yc,
                       preferred_element_type=f32, precision=hi)
    py = jax.nn.softmax(att, axis=1).astype(compute_dtype)
    y_att = jnp.einsum("bml,blk->bmk", jnp.swapaxes(py, 1, 2), xc,
                       preferred_element_type=f32, precision=hi)
    return x_att, y_att, att


if __name__ == "__main__":
    d_hidden = 32
    B, Lx, Ly = 2, 8, 8

    key = jax.random.PRNGKey(0)
    kx, ky, kw, kb = jax.random.split(key, 4)

    x = jax.random.normal(kx, (B, Lx, 2 * d_hidden), dtype=jnp.float32)
    y = jax.random.normal(ky, (B, Ly, d_hidden), dtype=jnp.float32)

    # Deterministic Linear(2*d_hidden -> d_hidden) params (PyTorch weight layout).
    bound = 1.0 / (2 * d_hidden) ** 0.5
    weight = jax.random.uniform(kw, (d_hidden, 2 * d_hidden),
                                minval=-bound, maxval=bound, dtype=jnp.float32)
    bias = jax.random.uniform(kb, (d_hidden,),
                              minval=-bound, maxval=bound, dtype=jnp.float32)

    # 1) Exact-parity path: f32 MXU operands, exact softmax normalization.
    x32, y32, a32 = base_attention_pos(x, y, weight, bias, mxu_dtype=jnp.float32)
    jax.block_until_ready((x32, y32, a32))
    rx, ry, ra = _reference(x, y, weight, bias, jnp.float32)
    assert jnp.allclose(a32, ra, atol=2e-3, rtol=2e-3)
    assert jnp.allclose(x32, rx, atol=2e-3, rtol=2e-3)
    assert jnp.allclose(y32, ry, atol=2e-3, rtol=2e-3)

    # 2) Performance default: bf16 MXU operands with f32 accumulation.  Compared
    #    against a reference that applies the same operand rounding; tolerance
    #    relaxed to cover bf16 rounding + deferred x_att normalization.
    xb, yb, ab = base_attention_pos(x, y, weight, bias)   # mxu_dtype=bf16 default
    jax.block_until_ready((xb, yb, ab))
    rxb, ryb, rab = _reference(x, y, weight, bias, jnp.bfloat16)
    assert jnp.allclose(ab, rab, atol=5e-2, rtol=5e-2)
    assert jnp.allclose(xb, rxb, atol=5e-2, rtol=5e-2)
    assert jnp.allclose(yb, ryb, atol=5e-2, rtol=5e-2)

    print("KERNEL_OK")
</pallas_src>

<mosaic_0001>
module attributes {stable_mosaic.version = 11 : i64} {
  func.func @_attention_pos_kernel(%arg0: i32, %arg1: memref<1x8x64xf32, #tpu.memory_space<vmem>>, %arg2: memref<1x8x32xf32, #tpu.memory_space<vmem>>, %arg3: memref<64x32xf32, #tpu.memory_space<vmem>>, %arg4: memref<1x32xf32, #tpu.memory_space<vmem>>, %arg5: memref<1x8x32xf32, #tpu.memory_space<vmem>>, %arg6: memref<1x8x64xf32, #tpu.memory_space<vmem>>, %arg7: memref<1x8x8xf32, #tpu.memory_space<vmem>>) attributes {dimension_semantics = [#tpu.dimension_semantics<parallel>], iteration_bounds = array<i64: 2>, scalar_prefetch = 0 : i64, scratch_operands = 0 : i64, tpu.core_type = #tpu.core_type<tc>, window_params = [{transform_indices = @transform_0, window_bounds = array<i64: 1, 8, 64>}, {transform_indices = @transform_1, window_bounds = array<i64: 1, 8, 32>}, {pipeline_mode = #tpu.pipeline_mode<synchronous>, transform_indices = @transform_2, window_bounds = array<i64: 64, 32>}, {pipeline_mode = #tpu.pipeline_mode<synchronous>, transform_indices = @transform_3, window_bounds = array<i64: 1, 32>}, {transform_indices = @transform_4, window_bounds = array<i64: 1, 8, 32>}, {transform_indices = @transform_5, window_bounds = array<i64: 1, 8, 64>}, {transform_indices = @transform_6, window_bounds = array<i64: 1, 8, 8>}]} {
    %c0 = arith.constant 0 : index
    %c0_0 = arith.constant 0 : index
    %c0_1 = arith.constant 0 : index
    %0 = vector.load %arg1[%c0, %c0_0, %c0_1] : memref<1x8x64xf32, #tpu.memory_space<vmem>>, vector<1x8x64xf32>
    %c0_2 = arith.constant 0 : index
    %c0_3 = arith.constant 0 : index
    %c0_4 = arith.constant 0 : index
    %1 = vector.load %arg2[%c0_2, %c0_3, %c0_4] : memref<1x8x32xf32, #tpu.memory_space<vmem>>, vector<1x8x32xf32>
    %c0_5 = arith.constant 0 : index
    %c0_6 = arith.constant 0 : index
    %2 = vector.load %arg3[%c0_5, %c0_6] : memref<64x32xf32, #tpu.memory_space<vmem>>, vector<64x32xf32>
    %c0_7 = arith.constant 0 : index
    %c0_8 = arith.constant 0 : index
    %3 = vector.load %arg4[%c0_7, %c0_8] : memref<1x32xf32, #tpu.memory_space<vmem>>, vector<1x32xf32>
    %4 = vector.shape_cast %0 : vector<1x8x64xf32> to vector<8x64xf32>
    %cst = arith.constant dense<0.000000e+00> : vector<8x32xf32>
    %5 = tpu.matmul %4, %2, %cst {dimension_numbers = #tpu.dot_dimension_numbers<[1], [0], [0], [1], [0, 0, 1, 1], [], []>} : vector<8x64xf32>, vector<64x32xf32>, vector<8x32xf32> -> vector<8x32xf32>
    %6 = vector.broadcast %3 : vector<1x32xf32> to vector<8x32xf32>
    %7 = arith.addf %5, %6 : vector<8x32xf32>
    %8 = vector.shape_cast %7 : vector<8x32xf32> to vector<1x8x32xf32>
    "tpu.trace_start"() <{level = 10 : i32, message = "bld,bmd->blm"}> : () -> ()
    %cst_9 = arith.constant dense<0.000000e+00> : vector<1x8x8xf32>
    %9 = tpu.matmul %8, %1, %cst_9 {dimension_numbers = #tpu.dot_dimension_numbers<[2], [2], [1], [1], [0, 0, 0, 1, 1, 1], [0], [0]>} : vector<1x8x32xf32>, vector<1x8x32xf32>, vector<1x8x8xf32> -> vector<1x8x8xf32>
    "tpu.trace_stop"() : () -> ()
    %c0_10 = arith.constant 0 : index
    %c0_11 = arith.constant 0 : index
    %c0_12 = arith.constant 0 : index
    %10 = vector.load %arg7[%c0_10, %c0_11, %c0_12] : memref<1x8x8xf32, #tpu.memory_space<vmem>>, vector<1x8x8xf32>
    tpu.vector_store %arg7[%c0_10, %c0_11, %c0_12], %9 {strides = array<i32>} : memref<1x8x8xf32, #tpu.memory_space<vmem>>, vector<1x8x8xf32>,
    %cst_13 = arith.constant dense<0xFF800000> : vector<1x8xf32>
    %11 = vector.multi_reduction <maximumf>, %9, %cst_13 [2] : vector<1x8x8xf32> to vector<1x8xf32>
    %12 = vector.shape_cast %11 : vector<1x8xf32> to vector<1x8x1xf32>
    %13 = vector.broadcast %12 : vector<1x8x1xf32> to vector<1x8x8xf32>
    %14 = arith.subf %9, %13 : vector<1x8x8xf32>
    %15 = math.exp %14 : vector<1x8x8xf32>
    %cst_14 = arith.constant dense<0.000000e+00> : vector<1x8xf32>
    %16 = vector.multi_reduction <add>, %15, %cst_14 [2] : vector<1x8x8xf32> to vector<1x8xf32>
    %17 = vector.shape_cast %16 : vector<1x8xf32> to vector<1x8x1xf32>
    %cst_15 = arith.constant 1.000000e+00 : f32
    %18 = vector.broadcast %cst_15 : f32 to vector<1x8x1xf32>
    %19 = arith.divf %18, %17 : vector<1x8x1xf32>
    "tpu.trace_start"() <{level = 10 : i32, message = "blm,bmd->bld"}> : () -> ()
    %cst_16 = arith.constant dense<0.000000e+00> : vector<1x8x32xf32>
    %20 = tpu.matmul %15, %1, %cst_16 {dimension_numbers = #tpu.dot_dimension_numbers<[2], [1], [1], [2], [0, 0, 0, 1, 1, 2], [0], [0]>} : vector<1x8x8xf32>, vector<1x8x32xf32>, vector<1x8x32xf32> -> vector<1x8x32xf32>
    "tpu.trace_stop"() : () -> ()
    %21 = vector.broadcast %19 : vector<1x8x1xf32> to vector<1x8x32xf32>
    %22 = arith.mulf %20, %21 : vector<1x8x32xf32>
    %c0_17 = arith.constant 0 : index
    %c0_18 = arith.constant 0 : index
    %c0_19 = arith.constant 0 : index
    %23 = vector.load %arg5[%c0_17, %c0_18, %c0_19] : memref<1x8x32xf32, #tpu.memory_space<vmem>>, vector<1x8x32xf32>
    tpu.vector_store %arg5[%c0_17, %c0_18, %c0_19], %22 {strides = array<i32>} : memref<1x8x32xf32, #tpu.memory_space<vmem>>, vector<1x8x32xf32>,
    %cst_20 = arith.constant dense<0xFF800000> : vector<1x8xf32>
    %24 = vector.multi_reduction <maximumf>, %9, %cst_20 [1] : vector<1x8x8xf32> to vector<1x8xf32>
    %25 = vector.shape_cast %24 : vector<1x8xf32> to vector<1x1x8xf32>
    %26 = vector.broadcast %25 : vector<1x1x8xf32> to vector<1x8x8xf32>
    %27 = arith.subf %9, %26 : vector<1x8x8xf32>
    %28 = math.exp %27 : vector<1x8x8xf32>
    %cst_21 = arith.constant dense<0.000000e+00> : vector<1x8xf32>
    %29 = vector.multi_reduction <add>, %28, %cst_21 [1] : vector<1x8x8xf32> to vector<1x8xf32>
    %30 = vector.shape_cast %29 : vector<1x8xf32> to vector<1x1x8xf32>
    %cst_22 = arith.constant 1.000000e+00 : f32
    %31 = vector.broadcast %cst_22 : f32 to vector<1x1x8xf32>
    %32 = arith.divf %31, %30 : vector<1x1x8xf32>
    %33 = vector.broadcast %32 : vector<1x1x8xf32> to vector<1x8x8xf32>
    %34 = arith.mulf %28, %33 : vector<1x8x8xf32>
    "tpu.trace_start"() <{level = 10 : i32, message = "blm,blc->bmc"}> : () -> ()
    %cst_23 = arith.constant dense<0.000000e+00> : vector<1x8x64xf32>
    %35 = tpu.matmul %34, %0, %cst_23 {dimension_numbers = #tpu.dot_dimension_numbers<[1], [1], [2], [2], [0, 0, 0, 2, 1, 2], [0], [0]>} : vector<1x8x8xf32>, vector<1x8x64xf32>, vector<1x8x64xf32> -> vector<1x8x64xf32>
    "tpu.trace_stop"() : () -> ()
    %c0_24 = arith.constant 0 : index
    %c0_25 = arith.constant 0 : index
    %c0_26 = arith.constant 0 : index
    %36 = vector.load %arg6[%c0_24, %c0_25, %c0_26] : memref<1x8x64xf32, #tpu.memory_space<vmem>>, vector<1x8x64xf32>
    tpu.vector_store %arg6[%c0_24, %c0_25, %c0_26], %35 {strides = array<i32>} : memref<1x8x64xf32, #tpu.memory_space<vmem>>, vector<1x8x64xf32>,
    return
  }
  func.func @transform_0(%arg0: i32) -> (i32, i32, i32) {
    %c0_i32 = arith.constant 0 : i32
    %c0_i32_0 = arith.constant 0 : i32
    %c0_i32_1 = arith.constant 0 : i32
    return %arg0, %c0_i32, %c0_i32_0 : i32, i32, i32
  }
  func.func @transform_1(%arg0: i32) -> (i32, i32, i32) {
    %c0_i32 = arith.constant 0 : i32
    %c0_i32_0 = arith.constant 0 : i32
    %c0_i32_1 = arith.constant 0 : i32
    return %arg0, %c0_i32, %c0_i32_0 : i32, i32, i32
  }
  func.func @transform_2(%arg0: i32) -> (i32, i32) {
    %c0_i32 = arith.constant 0 : i32
    %c0_i32_0 = arith.constant 0 : i32
    %c0_i32_1 = arith.constant 0 : i32
    return %c0_i32, %c0_i32_0 : i32, i32
  }
  func.func @transform_3(%arg0: i32) -> (i32, i32) {
    %c0_i32 = arith.constant 0 : i32
    %c0_i32_0 = arith.constant 0 : i32
    %c0_i32_1 = arith.constant 0 : i32
    return %c0_i32, %c0_i32_0 : i32, i32
  }
  func.func @transform_4(%arg0: i32) -> (i32, i32, i32) {
    %c0_i32 = arith.constant 0 : i32
    %c0_i32_0 = arith.constant 0 : i32
    %c0_i32_1 = arith.constant 0 : i32
    return %arg0, %c0_i32, %c0_i32_0 : i32, i32, i32
  }
  func.func @transform_5(%arg0: i32) -> (i32, i32, i32) {
    %c0_i32 = arith.constant 0 : i32
    %c0_i32_0 = arith.constant 0 : i32
    %c0_i32_1 = arith.constant 0 : i32
    return %arg0, %c0_i32, %c0_i32_0 : i32, i32, i32
  }
  func.func @transform_6(%arg0: i32) -> (i32, i32, i32) {
    %c0_i32 = arith.constant 0 : i32
    %c0_i32_0 = arith.constant 0 : i32
    %c0_i32_1 = arith.constant 0 : i32
    return %arg0, %c0_i32, %c0_i32_0 : i32, i32, i32
  }
}

</mosaic_0001>

<llo_original>
// kernel: tpu_custom_call.1
$region0: #{tpu_custom_call.1}
  #allocation0 [shape = 'u32[]', space=smem, size = 0x4, offset = 0x4, fixed_abs, tag = 'smem constant byte address 0x4 - core index']
  #allocation1 [shape = 'u32[72,128]{1,0:T(1,128)}', space=vmem, size = 0x9000, scoped, tag = 'internal scratch']
  %s0 = inlined_call_operand.vmem [shape: f32[2,8,64], index: 0, kind: input, shape index: {}]
  %s1 = inlined_call_operand.vmem [shape: f32[2,8,32], index: 1, kind: input, shape index: {}]
  %s2 = inlined_call_operand.vmem [shape: f32[64,32], index: 2, kind: input, shape index: {}]
  %s3 = inlined_call_operand.vmem [shape: f32[1,32], index: 3, kind: input, shape index: {}]
  %s4 = inlined_call_operand.hbm [shape: f32[2,8,32], index: 4, kind: output, shape index: {0}]
  %s5 = inlined_call_operand.hbm [shape: f32[2,8,64], index: 5, kind: output, shape index: {1}]
  %s6 = inlined_call_operand.hbm [shape: f32[2,8,8], index: 6, kind: output, shape index: {2}]
  %7 = xla_tuple %s4, %s5, %s6
  %s8 = sld [smem:[#allocation0]]
  $region65: #{tpu_custom_call.1} parent=0
    _
  %s10 = ssub.s32 1, %s8
  %s11 = scalar_select 0, %s10, %s8
  $region1: #{tpu_custom_call.1} parent=0
    #allocation2 [shape = 'u8[8192]{0}', space=vmem, size = 0x2000, scoped, tag = 'output window, operand 0']
    #allocation3 [shape = 's32[2]{0}', space=sflag, size = 0x8, scoped, tag = 'scoped memory for tpu_custom_call.1']
    #allocation4 [shape = 'u8[8192]{0}', space=vmem, size = 0x2000, scoped, tag = 'output window, operand 1']
    #allocation5 [shape = 's32[2]{0}', space=sflag, size = 0x8, scoped, tag = 'scoped memory for tpu_custom_call.1']
    #allocation6 [shape = 'u8[8192]{0}', space=vmem, size = 0x2000, scoped, tag = 'output window, operand 2']
    %12 = vsyncpa [#allocation3], 0
    %s13 = scalar_lea.sflag [#allocation3], 1
    %14 = vsyncpa %s13, 0
    %15 = vsyncpa [#allocation5], 0
    %s16 = scalar_lea.sflag [#allocation5], 1
    %17 = vsyncpa %s16, 0
    loop: start=0, step=1, limit=4
    $region2: #{tpu_custom_call.1} parent=1 // loop_pre_header
      _
    $region3: #{tpu_custom_call.1} parent=1 // loop_header
      %s19 = sphi 0, %s23
      %p20 = scmp.ge.s32.totalorder %s19, 4
      %s29 = sphi 0, %s31
      %s32 = sphi 0, %s29
      %s33 = sphi 0, %s32
      %s49 = sphi 0, %s33
      %s55 = sphi 0, %s57
      %s58 = sphi 0, %s55
      %s59 = sphi 0, %s58
      %s75 = sphi 0, %s59
      %s79 = sphi 0, %s79
      %s81 = sphi 0, %s79
      %s82 = sphi 0, %s81
      %s96 = sphi 0, %s82
      %s100 = sphi 0, %s100
      %s102 = sphi 0, %s100
      %s103 = sphi 0, %s102
      %s117 = sphi 0, %s103
      %s123 = sphi 0, %s125
      %s126 = sphi 0, %s123
      %s127 = sphi 0, %s126
      %s143 = sphi 0, %s127
      %s149 = sphi 0, %s151
      %s152 = sphi 0, %s149
      %s153 = sphi 0, %s152
      %s169 = sphi 0, %s153
      %s175 = sphi 0, %s177
      %s178 = sphi 0, %s175
      %s179 = sphi 0, %s178
      %s195 = sphi 0, %s179
    $region4: #{tpu_custom_call.1} parent=1 // loop_header_branch
      %22 = sbr.rel (%p20) target = $region8
    $region5: #{tpu_custom_call.1} parent=1 // loop_body
      %s24 = ssub.s32 %s19, 1
      %s25 = ssub.s32 %s19, 2
      %s26 = sadd.s32 %s19, 1
      %s27 = ssub.s32 %s19, %s26
      %p28 = scmp.eq.s32.totalorder %s27, 0
      %s30 = sadd.s32 %s29, 1
      %s31 = scalar_select %p28, %s29, %s30
      %p34 = pneg %p28
      %p35 = scmp.eq.s32.totalorder %s19, 1
      %p36 = por %p34, %p35
      %p37 = scmp.ne.s32.totalorder %s29, %s32
      %p38 = scmp.eq.s32.totalorder %s19, 0
      %p39 = por %p37, %p38
      %p40 = scmp.ne.s32.totalorder %s29, %s32
      %p41 = scmp.eq.s32.totalorder %s24, 1
      %p42 = por %p40, %p41
      %p43 = scmp.ne.s32.totalorder %s32, %s33
      %p44 = scmp.eq.s32.totalorder %s24, 0
      %p45 = por %p43, %p44
      %p46 = scmp.ne.s32.totalorder %s32, %s33
      %p47 = scmp.eq.s32.totalorder %s25, 1
      %p48 = por %p46, %p47
      %p50 = scmp.ne.s32.totalorder %s33, %s49
      %p51 = scmp.eq.s32.totalorder %s25, 0
      %p52 = por %p50, %p51
      %s53 = ssub.s32 %s19, %s26
      %p54 = scmp.eq.s32.totalorder %s53, 0
      %s56 = sadd.s32 %s55, 1
      %s57 = scalar_select %p54, %s55, %s56
      %p60 = pneg %p54
      %p61 = scmp.eq.s32.totalorder %s19, 1
      %p62 = por %p60, %p61
      %p63 = scmp.ne.s32.totalorder %s55, %s58
      %p64 = scmp.eq.s32.totalorder %s19, 0
      %p65 = por %p63, %p64
      %p66 = scmp.ne.s32.totalorder %s55, %s58
      %p67 = scmp.eq.s32.totalorder %s24, 1
      %p68 = por %p66, %p67
      %p69 = scmp.ne.s32.totalorder %s58, %s59
      %p70 = scmp.eq.s32.totalorder %s24, 0
      %p71 = por %p69, %p70
      %p72 = scmp.ne.s32.totalorder %s58, %s59
      %p73 = scmp.eq.s32.totalorder %s25, 1
      %p74 = por %p72, %p73
      %p76 = scmp.ne.s32.totalorder %s59, %s75
      %p77 = scmp.eq.s32.totalorder %s25, 0
      %p78 = por %p76, %p77
      %s80 = sadd.s32 %s79, 1
      %p83 = scmp.eq.s32.totalorder %s19, 1
      %p84 = scmp.ne.s32.totalorder %s79, %s81
      %p85 = scmp.eq.s32.totalorder %s19, 0
      %p86 = por %p84, %p85
      %p87 = scmp.ne.s32.totalorder %s79, %s81
      %p88 = scmp.eq.s32.totalorder %s24, 1
      %p89 = por %p87, %p88
      %p90 = scmp.ne.s32.totalorder %s81, %s82
      %p91 = scmp.eq.s32.totalorder %s24, 0
      %p92 = por %p90, %p91
      %p93 = scmp.ne.s32.totalorder %s81, %s82
      %p94 = scmp.eq.s32.totalorder %s25, 1
      %p95 = por %p93, %p94
      %p97 = scmp.ne.s32.totalorder %s82, %s96
      %p98 = scmp.eq.s32.totalorder %s25, 0
      %p99 = por %p97, %p98
      %s101 = sadd.s32 %s100, 1
      %p104 = scmp.eq.s32.totalorder %s19, 1
      %p105 = scmp.ne.s32.totalorder %s100, %s102
      %p106 = scmp.eq.s32.totalorder %s19, 0
      %p107 = por %p105, %p106
      %p108 = scmp.ne.s32.totalorder %s100, %s102
      %p109 = scmp.eq.s32.totalorder %s24, 1
      %p110 = por %p108, %p109
      %p111 = scmp.ne.s32.totalorder %s102, %s103
      %p112 = scmp.eq.s32.totalorder %s24, 0
      %p113 = por %p111, %p112
      %p114 = scmp.ne.s32.totalorder %s102, %s103
      %p115 = scmp.eq.s32.totalorder %s25, 1
      %p116 = por %p114, %p115
      %p118 = scmp.ne.s32.totalorder %s103, %s117
      %p119 = scmp.eq.s32.totalorder %s25, 0
      %p120 = por %p118, %p119
      %s121 = ssub.s32 %s19, %s26
      %p122 = scmp.eq.s32.totalorder %s121, 0
      %s124 = sadd.s32 %s123, 1
      %s125 = scalar_select %p122, %s123, %s124
      %p128 = pneg %p122
      %p129 = scmp.eq.s32.totalorder %s19, 1
      %p130 = por %p128, %p129
      %p131 = scmp.ne.s32.totalorder %s123, %s126
      %p132 = scmp.eq.s32.totalorder %s19, 0
      %p133 = por %p131, %p132
      %p134 = scmp.ne.s32.totalorder %s123, %s126
      %p135 = scmp.eq.s32.totalorder %s24, 1
      %p136 = por %p134, %p135
      %p137 = scmp.ne.s32.totalorder %s126, %s127
      %p138 = scmp.eq.s32.totalorder %s24, 0
      %p139 = por %p137, %p138
      %p140 = scmp.ne.s32.totalorder %s126, %s127
      %p141 = scmp.eq.s32.totalorder %s25, 1
      %p142 = por %p140, %p141
      %p144 = scmp.ne.s32.totalorder %s127, %s143
      %p145 = scmp.eq.s32.totalorder %s25, 0
      %p146 = por %p144, %p145
      %s147 = ssub.s32 %s19, %s26
      %p148 = scmp.eq.s32.totalorder %s147, 0
      %s150 = sadd.s32 %s149, 1
      %s151 = scalar_select %p148, %s149, %s150
      %p154 = pneg %p148
      %p155 = scmp.eq.s32.totalorder %s19, 1
      %p156 = por %p154, %p155
      %p157 = scmp.ne.s32.totalorder %s149, %s152
      %p158 = scmp.eq.s32.totalorder %s19, 0
      %p159 = por %p157, %p158
      %p160 = scmp.ne.s32.totalorder %s149, %s152
      %p161 = scmp.eq.s32.totalorder %s24, 1
      %p162 = por %p160, %p161
      %p163 = scmp.ne.s32.totalorder %s152, %s153
      %p164 = scmp.eq.s32.totalorder %s24, 0
      %p165 = por %p163, %p164
      %p166 = scmp.ne.s32.totalorder %s152, %s153
      %p167 = scmp.eq.s32.totalorder %s25, 1
      %p168 = por %p166, %p167
      %p170 = scmp.ne.s32.totalorder %s153, %s169
      %p171 = scmp.eq.s32.totalorder %s25, 0
      %p172 = por %p170, %p171
      %s173 = ssub.s32 %s19, %s26
      %p174 = scmp.eq.s32.totalorder %s173, 0
      %s176 = sadd.s32 %s175, 1
      %s177 = scalar_select %p174, %s175, %s176
      %p180 = pneg %p174
      %p181 = scmp.eq.s32.totalorder %s19, 1
      %p182 = por %p180, %p181
      %p183 = scmp.ne.s32.totalorder %s175, %s178
      %p184 = scmp.eq.s32.totalorder %s19, 0
      %p185 = por %p183, %p184
      %p186 = scmp.ne.s32.totalorder %s175, %s178
      %p187 = scmp.eq.s32.totalorder %s24, 1
      %p188 = por %p186, %p187
      %p189 = scmp.ne.s32.totalorder %s178, %s179
      %p190 = scmp.eq.s32.totalorder %s24, 0
      %p191 = por %p189, %p190
      %p192 = scmp.ne.s32.totalorder %s178, %s179
      %p193 = scmp.eq.s32.totalorder %s25, 1
      %p194 = por %p192, %p193
      %p196 = scmp.ne.s32.totalorder %s179, %s195
      %p197 = scmp.eq.s32.totalorder %s25, 0
      %p198 = por %p196, %p197
      %p199 = scmp.le.s32.totalorder 1, %s19
      %p200 = scmp.lt.s32.totalorder %s19, 3
      %p201 = pnand %p199, %p200
      %p202 = pneg %p201
      // Predicated region
      $region9: #{tpu_custom_call.1} parent=5 // pred_check
        _
      $region10: #{tpu_custom_call.1} parent=5 // pred_check_branch
        %204 = sbr.rel (%p201) target = $region12
      $region11: #{tpu_custom_call.1} parent=5 // pred_region
        %s205 = ssub.s32 %s19, 1
        // Predicated region
        $region13: #{tpu_custom_call.1} parent=11 // pred_check
          %p206 = pneg %p92
        $region14: #{tpu_custom_call.1} parent=11 // pred_check_branch
          %208 = sbr.rel (%p206) target = $region16
        $region15: #{tpu_custom_call.1} parent=11 // pred_region
          _
        $region16: #{tpu_custom_call.1} parent=11 // pred_fallthru
          _
        // Predicated region
        $region17: #{tpu_custom_call.1} parent=11 // pred_check
          %p209 = pneg %p113
        $region18: #{tpu_custom_call.1} parent=11 // pred_check_branch
          %211 = sbr.rel (%p209) target = $region20
        $region19: #{tpu_custom_call.1} parent=11 // pred_region
          _
        $region20: #{tpu_custom_call.1} parent=11 // pred_fallthru
          _
      $region12: #{tpu_custom_call.1} parent=5 // pred_fallthru
        _
      %p212 = scmp.lt.s32.totalorder %s19, 2
      // Predicated region
      $region21: #{tpu_custom_call.1} parent=5 // pred_check
        %p213 = pneg %p212
      $region22: #{tpu_custom_call.1} parent=5 // pred_check_branch
        %215 = sbr.rel (%p213) target = $region24
      $region23: #{tpu_custom_call.1} parent=5 // pred_region
        // Predicated region
        $region25: #{tpu_custom_call.1} parent=23 // pred_check
          %p216 = pneg %p39
        $region26: #{tpu_custom_call.1} parent=23 // pred_check_branch
          %218 = sbr.rel (%p216) target = $region28
        $region27: #{tpu_custom_call.1} parent=23 // pred_region
          %p219 = scmp.lt.s32.totalorder %s19, 1
          %s220 = scalar_select %p219, %s19, 1
          %s221 = smul.addr %s220, 8
          %s222 = scalar_lea.vmem %s0, %s221
        $region28: #{tpu_custom_call.1} parent=23 // pred_fallthru
          _
        // Predicated region
        $region29: #{tpu_custom_call.1} parent=23 // pred_check
          %p223 = pneg %p65
        $region30: #{tpu_custom_call.1} parent=23 // pred_check_branch
          %225 = sbr.rel (%p223) target = $region32
        $region31: #{tpu_custom_call.1} parent=23 // pred_region
          %p226 = scmp.lt.s32.totalorder %s19, 1
          %s227 = scalar_select %p226, %s19, 1
          %s228 = smul.addr %s227, 8
          %s229 = scalar_lea.vmem %s1, %s228
        $region32: #{tpu_custom_call.1} parent=23 // pred_fallthru
          _
      $region24: #{tpu_custom_call.1} parent=5 // pred_fallthru
        _
      %p230 = scmp.le.s32.totalorder 1, %s19
      %p231 = scmp.lt.s32.totalorder %s19, 3
      %p232 = pnand %p230, %p231
      %p233 = pneg %p232
      // Predicated region
      $region33: #{tpu_custom_call.1} parent=5 // pred_check
        _
      $region34: #{tpu_custom_call.1} parent=5 // pred_check_branch
        %235 = sbr.rel (%p232) target = $region36
      $region35: #{tpu_custom_call.1} parent=5 // pred_region
        %s236 = ssub.s32 %s19, 1
        %p237 = scmp.lt.s32.totalorder %s24, 1
        %s238 = scalar_select %p237, %s24, 1
        %s239 = smul.addr %s238, 8
        %s240 = scalar_lea.vmem %s0, %s239
        %p241 = pneg %p45
        %p242 = pneg %p42
        %p243 = scmp.lt.s32.totalorder %s24, 1
        %s244 = scalar_select %p243, %s24, 1
        %s245 = smul.addr %s244, 8
        %s246 = scalar_lea.vmem %s1, %s245
        %p247 = pneg %p71
        %p248 = pneg %p68
        %p249 = pneg %p92
        %p250 = pneg %p89
        %p251 = pneg %p113
        %p252 = pneg %p110
        %p253 = pneg %p139
        %p254 = pneg %p136
        %s255 = sand.u32 %s126, 1
        %s256 = scalar_lea.sflag [#allocation3], %s255
        %s257 = sand.u32 %s126, 1
        %s258 = smul.addr %s257, 8
        %s259 = scalar_lea.vmem [#allocation2], %s258
        %p260 = pneg %p165
        %p261 = pneg %p162
        %s262 = sand.u32 %s24, 1
        %s263 = scalar_lea.sflag [#allocation5], %s262
        %s264 = sand.u32 %s152, 1
        %s265 = smul.addr %s264, 8
        %s266 = scalar_lea.vmem [#allocation4], %s265
        %p267 = pneg %p191
        %p268 = pneg %p188
        %s269 = sand.u32 %s24, 1
        %s270 = scalar_lea.sflag [#allocation5], %s269
        %s271 = sand.u32 %s178, 1
        %s272 = smul.addr %s271, 8
        %s273 = scalar_lea.vmem [#allocation6], %s272
        %p274 = scmp.lt.s32.totalorder %s24, 1
        %s275 = scalar_select %p274, %s24, 1
        %s276 = smul.addr %s275, 8
        %s277 = scalar_lea.vmem %s0, %s276
        %p278 = scmp.lt.s32.totalorder %s24, 1
        %s279 = scalar_select %p278, %s24, 1
        %s280 = smul.addr %s279, 8
        %s281 = scalar_lea.vmem %s1, %s280
        %v282 = vld [vmem:[%s277] sm:$0xff]
        %v283 = vld [vmem:[%s281] sm:$0xff]
        %v284 = vld [vmem:[%s2] sm:$0xff]
        %v285 = vld [vmem:[%s2 + $0x8] sm:$0xff]
        %v286 = vld [vmem:[%s2 + $0x10] sm:$0xff]
        %v287 = vld [vmem:[%s2 + $0x18] sm:$0xff]
        %v288 = vld [vmem:[%s2 + $0x20] sm:$0xff]
        %v289 = vld [vmem:[%s2 + $0x28] sm:$0xff]
        %v290 = vld [vmem:[%s2 + $0x30] sm:$0xff]
        %v291 = vld [vmem:[%s2 + $0x38] sm:$0xff]
        %v292 = vld [vmem:[%s3] sm:$0x1]
        %v294 = vperm.slane %v292, 0
        %vm296 = vcmask 523264
        %v298 = vsel %vm296, %v282, 0
        %300 = vmatpush.msra.mxu0 0.0
        %301 = vmatpush.msra.mxu0 0.0
        %302 = vmatpush.msra.mxu0 0.0
        %303 = vmatpush.msra.mxu0 0.0
        %304 = vmatpush.msra.mxu0 0.0
        %305 = vmatpush.msra.mxu0 0.0
        %306 = vmatpush.msra.mxu0 0.0
        %307 = vmatpush.msra.mxu0 0.0
        %308 = vmatpush.msra.mxu0 %v291
        %309 = vmatpush.msra.mxu0 %v290
        %310 = vmatpush.msra.mxu0 %v289
        %311 = vmatpush.msra.mxu0 %v288
        %312 = vmatpush.msra.mxu0 %v287
        %313 = vmatpush.msra.mxu0 %v286
        %314 = vmatpush.msra.mxu0 %v285
        %315 = vmatpush.msra.mxu0 %v284
        %316 = vmatmul.f32.gmra.mxu0 %v298
        %v317 = vpop.f32.mrf.mxu0
        %v318 = vadd.f32 %v294, %v317
        %319 = vdwg.mxu0
        %vm320 = vcmask 261120
        %v322 = vsel %vm320, %v318, 0
        %v325 = vsel %vm320, %v283, 0
        %327 = vmatpush.xpose.msra.mxu0 0.0
        %328 = vmatpush.xpose.msra.mxu0 0.0
        %329 = vmatpush.xpose.msra.mxu0 0.0
        %330 = vmatpush.xpose.msra.mxu0 0.0
        %331 = vmatpush.xpose.msra.mxu0 0.0
        %332 = vmatpush.xpose.msra.mxu0 0.0
        %333 = vmatpush.xpose.msra.mxu0 0.0
        %334 = vmatpush.xpose.msra.mxu0 0.0
        %335 = vmatpush.xpose.msra.mxu0 0.0
        %336 = vmatpush.xpose.msra.mxu0 0.0
        %337 = vmatpush.xpose.msra.mxu0 0.0
        %338 = vmatpush.xpose.msra.mxu0 0.0
        %339 = vmatpush.xpose.msra.mxu0 0.0
        %340 = vmatpush.xpose.msra.mxu0 0.0
        %341 = vmatpush.xpose.msra.mxu0 0.0
        %342 = vmatpush.xpose.msra.mxu0 %v325
        %343 = vmatmul.f32.gmra.mxu0 %v322
        %v344 = vpop.f32.mrf.mxu0
        %v345 = vadd.f32 0.0, %v344
        %346 = vdwg.mxu0
        %vm347 = vcmask 64512
        %348 = vst.msk [vmem:[%s273] sm:$0xff] %vm347, %v345
        %v349 = vsel %vm347, %v345, -inf
        %350 = vmax.xlane.f32.xlu0 %v349
        %v351 = vpop.xlane.xlu0 %350
        %v352 = vsub.f32 %v345, %v351
        %v353 = vmul.f32 %v352, 1.442695
        %v354 = vpow.pop %v353
        %v355 = vsel %vm347, %v354, 0.0
        %356 = vadd.xlane.f32.xlu0 %v355
        %v357 = vpop.xlane.xlu0 %356
        %v358 = vrcp.pop %v357
        %v359 = vmul.f32 %v357, %v358
        %v360 = vsub.f32 1.0, %v359
        %v361 = vmul.f32 %v358, %v360
        %v362 = vadd.f32 %v358, %v361
        %vm363 = vweird.f32 %v357
        %vm364 = vweird.f32 %v358
        %vm365 = vmor %vm363, %vm364
        %v366 = vsel %vm365, %v358, %v362
        %v367 = vand.u32 2147483647, %v357
        %vm368 = vcmp.eq.f32.partialorder %v367, 8.507059e+37
        %v369 = vand.u32 %v357, 2147483648
        %v370 = vor.u32 1.1754944e-38, %v369
        %v371 = vsel %vm368, %v370, %v366
        %v372 = vmul.f32 1.0, %v371
        %v374 = vsel %vm347, %v354, 0
        %376 = vmatpush.msra.mxu0 0.0
        %377 = vmatpush.msra.mxu0 0.0
        %378 = vmatpush.msra.mxu0 0.0
        %379 = vmatpush.msra.mxu0 0.0
        %380 = vmatpush.msra.mxu0 0.0
        %381 = vmatpush.msra.mxu0 0.0
        %382 = vmatpush.msra.mxu0 0.0
        %383 = vmatpush.msra.mxu0 0.0
        %384 = vmatpush.msra.mxu0 0.0
        %385 = vmatpush.msra.mxu0 0.0
        %386 = vmatpush.msra.mxu0 0.0
        %387 = vmatpush.msra.mxu0 0.0
        %388 = vmatpush.msra.mxu0 0.0
        %389 = vmatpush.msra.mxu0 0.0
        %390 = vmatpush.msra.mxu0 0.0
        %391 = vmatpush.msra.mxu0 %v283
        %392 = vmatmul.f32.gmra.mxu0 %v374
        %v393 = vpop.f32.mrf.mxu0
        %v394 = vadd.f32 0.0, %v393
        %395 = vdwg.mxu0
        %v396 = vmul.f32 %v394, %v372
        %397 = vst.msk [vmem:[%s259] sm:$0xff] %vm320, %v396
        %v398 = vrot.slane %v349, 4
        %v399 = vmax.f32 %v349, %v398
        %v400 = vrot.slane %v399, 2
        %v401 = vmax.f32 %v399, %v400
        %v402 = vrot.slane %v401, 1
        %v403 = vmax.f32 %v401, %v402
        %v404 = vsub.f32 %v345, %v403
        %v405 = vmul.f32 %v404, 1.442695
        %v406 = vpow.pop %v405
        %v407 = vsel %vm347, %v406, 0.0
        %v408 = vrot.slane %v407, 4
        %v409 = vadd.f32 %v407, %v408
        %v410 = vrot.slane %v409, 2
        %v411 = vadd.f32 %v409, %v410
        %v412 = vrot.slane %v411, 1
        %v413 = vadd.f32 %v411, %v412
        %v414 = vrcp.pop %v413
        %v415 = vmul.f32 %v413, %v414
        %v416 = vsub.f32 1.0, %v415
        %v417 = vmul.f32 %v414, %v416
        %v418 = vadd.f32 %v414, %v417
        %vm419 = vweird.f32 %v413
        %vm420 = vweird.f32 %v414
        %vm421 = vmor %vm419, %vm420
        %v422 = vsel %vm421, %v414, %v418
        %v423 = vand.u32 2147483647, %v413
        %vm424 = vcmp.eq.f32.partialorder %v423, 8.507059e+37
        %v425 = vand.u32 %v413, 2147483648
        %v426 = vor.u32 1.1754944e-38, %v425
        %v427 = vsel %vm424, %v426, %v422
        %v428 = vmul.f32 1.0, %v427
        %v429 = vmul.f32 %v406, %v428
        %430 = vxpose.xlu0.b32.start [1/16] %v429, 128
        %431 = vxpose.xlu0.b32.cont [2/16] 0.0, 128
        %432 = vxpose.xlu0.b32.cont [3/16] 0.0, 128
        %433 = vxpose.xlu0.b32.cont [4/16] 0.0, 128
        %434 = vxpose.xlu0.b32.cont [5/16] 0.0, 128
        %435 = vxpose.xlu0.b32.cont [6/16] 0.0, 128
        %436 = vxpose.xlu0.b32.cont [7/16] 0.0, 128
        %437 = vxpose.xlu0.b32.cont [8/16] 0.0, 128
        %438 = vxpose.xlu0.b32.cont [9/16] 0.0, 128
        %439 = vxpose.xlu0.b32.cont [10/16] 0.0, 128
        %440 = vxpose.xlu0.b32.cont [11/16] 0.0, 128
        %441 = vxpose.xlu0.b32.cont [12/16] 0.0, 128
        %442 = vxpose.xlu0.b32.cont [13/16] 0.0, 128
        %443 = vxpose.xlu0.b32.cont [14/16] 0.0, 128
        %444 = vxpose.xlu0.b32.cont [15/16] 0.0, 128
        %445 = vxpose.xlu0.b32.end [16/16] 0.0, 128
        %v446 = vpop.trf.xlu0
        %v447 = vpop.trf.xlu0
        %v448 = vpop.trf.xlu0
        %v449 = vpop.trf.xlu0
        %v450 = vpop.trf.xlu0
        %v451 = vpop.trf.xlu0
        %v452 = vpop.trf.xlu0
        %v453 = vpop.trf.xlu0
        %v454 = vpop.trf.xlu0
        %v455 = vpop.trf.xlu0
        %v456 = vpop.trf.xlu0
        %v457 = vpop.trf.xlu0
        %v458 = vpop.trf.xlu0
        %v459 = vpop.trf.xlu0
        %v460 = vpop.trf.xlu0
        %v461 = vpop.trf.xlu0
        %v463 = vsel %vm347, %v446, 0
        %465 = vmatpush.msra.mxu0 0.0
        %466 = vmatpush.msra.mxu0 0.0
        %467 = vmatpush.msra.mxu0 0.0
        %468 = vmatpush.msra.mxu0 0.0
        %469 = vmatpush.msra.mxu0 0.0
        %470 = vmatpush.msra.mxu0 0.0
        %471 = vmatpush.msra.mxu0 0.0
        %472 = vmatpush.msra.mxu0 0.0
        %473 = vmatpush.msra.mxu0 0.0
        %474 = vmatpush.msra.mxu0 0.0
        %475 = vmatpush.msra.mxu0 0.0
        %476 = vmatpush.msra.mxu0 0.0
        %477 = vmatpush.msra.mxu0 0.0
        %478 = vmatpush.msra.mxu0 0.0
        %479 = vmatpush.msra.mxu0 0.0
        %480 = vmatpush.msra.mxu0 %v282
        %481 = vmatmul.f32.gmra.mxu0 %v463
        %v482 = vpop.f32.mrf.mxu0
        %v483 = vadd.f32 0.0, %v482
        %484 = vdwg.mxu0
        %485 = vst.msk [vmem:[%s266] sm:$0xff] %vm296, %v483
        %s486 = sand.u32 %s126, 1
        %s487 = scalar_lea.sflag [#allocation3], %s486
        %s488 = sand.u32 %s126, 1
        %s489 = smul.addr %s488, 8
        %s490 = scalar_lea.vmem [#allocation2], %s489
        %s491 = sand.u32 %s24, 1
        %s492 = scalar_lea.sflag [#allocation5], %s491
        %s493 = sand.u32 %s152, 1
        %s494 = smul.addr %s493, 8
        %s495 = scalar_lea.vmem [#allocation4], %s494
        %s496 = sand.u32 %s24, 1
        %s497 = scalar_lea.sflag [#allocation5], %s496
        %s498 = sand.u32 %s178, 1
        %s499 = smul.addr %s498, 8
        %s500 = scalar_lea.vmem [#allocation6], %s499
        // Predicated region
        $region37: #{tpu_custom_call.1} parent=35 // pred_check
          %p501 = pneg %p136
        $region38: #{tpu_custom_call.1} parent=35 // pred_check_branch
          %503 = sbr.rel (%p501) target = $region40
        $region39: #{tpu_custom_call.1} parent=35 // pred_region
          %505 = vsyncadd %s487, 0
          %s506 = smul.addr %s24, 8
          %s507 = scalar_lea.hbm %s4, %s506
          %s509 = sshll.u32 %s490, 4
          %s510 = int_to_ptr.vmem [resolvable:$true] %s509
          %s511 = sshll.u32 %s507, 4
          %s512 = int_to_ptr.hbm [resolvable:$true] %s511
          %514 = dma.vmem_to_hbm [thread:$0]  %s510, 128, %s512, %s487
        $region40: #{tpu_custom_call.1} parent=35 // pred_fallthru
          _
        // Predicated region
        $region41: #{tpu_custom_call.1} parent=35 // pred_check
          %p515 = pneg %p162
        $region42: #{tpu_custom_call.1} parent=35 // pred_check_branch
          %517 = sbr.rel (%p515) target = $region44
        $region43: #{tpu_custom_call.1} parent=35 // pred_region
          %519 = vsyncadd %s492, 0
          %s520 = smul.addr %s24, 8
          %s521 = scalar_lea.hbm %s5, %s520
          %s523 = sshll.u32 %s495, 4
          %s524 = int_to_ptr.vmem [resolvable:$true] %s523
          %s525 = sshll.u32 %s521, 4
          %s526 = int_to_ptr.hbm [resolvable:$true] %s525
          %528 = dma.vmem_to_hbm [thread:$0]  %s524, 128, %s526, %s492
        $region44: #{tpu_custom_call.1} parent=35 // pred_fallthru
          _
        // Predicated region
        $region45: #{tpu_custom_call.1} parent=35 // pred_check
          %p529 = pneg %p188
        $region46: #{tpu_custom_call.1} parent=35 // pred_check_branch
          %531 = sbr.rel (%p529) target = $region48
        $region47: #{tpu_custom_call.1} parent=35 // pred_region
          %533 = vsyncadd %s497, 0
          %s534 = smul.addr %s24, 8
          %s535 = scalar_lea.hbm %s6, %s534
          %s537 = sshll.u32 %s500, 4
          %s538 = int_to_ptr.vmem [resolvable:$true] %s537
          %s539 = sshll.u32 %s535, 4
          %s540 = int_to_ptr.hbm [resolvable:$true] %s539
          %542 = dma.vmem_to_hbm [thread:$0]  %s538, 128, %s540, %s497
        $region48: #{tpu_custom_call.1} parent=35 // pred_fallthru
          _
      $region36: #{tpu_custom_call.1} parent=5 // pred_fallthru
        _
      %p543 = scmp.le.s32.totalorder 2, %s19
      // Predicated region
      $region49: #{tpu_custom_call.1} parent=5 // pred_check
        %p544 = pneg %p543
      $region50: #{tpu_custom_call.1} parent=5 // pred_check_branch
        %546 = sbr.rel (%p544) target = $region52
      $region51: #{tpu_custom_call.1} parent=5 // pred_region
        %s547 = ssub.s32 %s19, 2
        // Predicated region
        $region53: #{tpu_custom_call.1} parent=51 // pred_check
          %p548 = pneg %p142
        $region54: #{tpu_custom_call.1} parent=51 // pred_check_branch
          %550 = sbr.rel (%p548) target = $region56
        $region55: #{tpu_custom_call.1} parent=51 // pred_region
          %s551 = sand.u32 %s127, 1
          %s552 = scalar_lea.sflag [#allocation3], %s551
          %s553 = sand.u32 %s127, 1
          %s554 = smul.addr %s553, 8
          %s555 = scalar_lea.vmem [#allocation2], %s554
          %557 = dma.done %s552, 128
        $region56: #{tpu_custom_call.1} parent=51 // pred_fallthru
          _
        // Predicated region
        $region57: #{tpu_custom_call.1} parent=51 // pred_check
          %p558 = pneg %p168
        $region58: #{tpu_custom_call.1} parent=51 // pred_check_branch
          %560 = sbr.rel (%p558) target = $region60
        $region59: #{tpu_custom_call.1} parent=51 // pred_region
          %s561 = sand.u32 %s25, 1
          %s562 = scalar_lea.sflag [#allocation5], %s561
          %s563 = sand.u32 %s153, 1
          %s564 = smul.addr %s563, 8
          %s565 = scalar_lea.vmem [#allocation4], %s564
          %567 = dma.done %s562, 128
        $region60: #{tpu_custom_call.1} parent=51 // pred_fallthru
          _
        // Predicated region
        $region61: #{tpu_custom_call.1} parent=51 // pred_check
          %p568 = pneg %p194
        $region62: #{tpu_custom_call.1} parent=51 // pred_check_branch
          %570 = sbr.rel (%p568) target = $region64
        $region63: #{tpu_custom_call.1} parent=51 // pred_region
          %s571 = sand.u32 %s25, 1
          %s572 = scalar_lea.sflag [#allocation5], %s571
          %s573 = sand.u32 %s179, 1
          %s574 = smul.addr %s573, 8
          %s575 = scalar_lea.vmem [#allocation6], %s574
          %577 = dma.done %s572, 128
        $region64: #{tpu_custom_call.1} parent=51 // pred_fallthru
          _
      $region52: #{tpu_custom_call.1} parent=5 // pred_fallthru
        _
    $region6: #{tpu_custom_call.1} parent=1 // loop_footer
      %s23 = sadd.s32 1, %s19
    $region7: #{tpu_custom_call.1} parent=1 // loop_footer_branch
      %18 = sbr.rel target = $region3
    $region8: #{tpu_custom_call.1} parent=1 // loop_exit
      _
    %578 = vsyncpa [#allocation3], 1
    %s579 = scalar_lea.sflag [#allocation3], 1
    %580 = vsyncpa %s579, 1
    %581 = vsyncpa [#allocation5], 1
    %s582 = scalar_lea.sflag [#allocation5], 1
    %583 = vsyncpa %s582, 1

</llo_original>
